<compile_context>
chip_gen: v5e
topology: v5e:2x2
jax: 0.10.0
libtpu: 0.0.40
codegen_flags: <defaults>
</compile_context>

<pallas_src>
import functools

import jax
import jax.numpy as jnp
from jax.experimental import pallas as pl
from jax.experimental.pallas import tpu as pltpu

_LANE = 128


def _round_up(x: int, m: int) -> int:
    return ((x + m - 1) // m) * m


def _cdiv(a: int, b: int) -> int:
    return -(-a // b)


# ---------------------------------------------------------------------------
# Kernel
# ---------------------------------------------------------------------------
def _fgb_kernel(feat_ref, w1_ref, b1_ref, w2_ref, b2_ref, cv_ref, out_ref, att_ref):
    """One (batch, pixel-tile, D-chunk) grid step.

    feat_ref : (1, Cf, TN)        w1: (Ch, Cf)   b1: (Ch, 1)
    w2       : (Ccv, Ch)          b2: (Ccv, 1)
    cv_ref / out_ref : (1, Ccv, Dc, TN)
    att_ref  : VMEM scratch (Ccv, TN) f32 — persists across the D-chunk grid axis.
    """
    # The attention map depends only on (batch, pixel tile): compute it once per
    # pixel tile (D chunks are the innermost grid axis) and reuse across D chunks.
    @pl.when(pl.program_id(2) == 0)
    def _compute_attention():
        feat = feat_ref[0]                                          # (Cf, TN)
        # Conv1x1 (+ folded eval-mode BatchNorm) -> ReLU.
        h = jnp.dot(w1_ref[...], feat, preferred_element_type=jnp.float32)
        h = jnp.maximum(h + b1_ref[...], 0.0)                       # (Ch, TN) f32
        # Conv1x1 -> sigmoid.
        att = jnp.dot(w2_ref[...], h.astype(w2_ref.dtype),
                      preferred_element_type=jnp.float32) + b2_ref[...]
        att_ref[...] = jax.nn.sigmoid(att)                          # (Ccv, TN) f32

    # Modulate the cost volume channel by channel: no (Ccv, Dc, TN) f32 temporary,
    # lane-dense stores, f32 multiply with downcast only on the store.
    ccv = out_ref.shape[1]
    for c in range(ccv):
        att_c = att_ref[pl.ds(c, 1), :]                             # (1, TN) f32
        cv_c = cv_ref[0, c, :, :].astype(jnp.float32)               # (Dc, TN) f32
        out_ref[0, c, :, :] = (att_c * cv_c).astype(out_ref.dtype)


# ---------------------------------------------------------------------------
# Parameters / BatchNorm folding
# ---------------------------------------------------------------------------
def make_params(cv_channel: int, feat_channel: int, key=None):
    """Deterministic synthetic parameters matching the PyTorch module shapes."""
    if key is None:
        key = jax.random.PRNGKey(0)
    k1, k2, k3, k4 = jax.random.split(key, 4)
    ch = feat_channel // 2
    return {
        # Conv2d(feat_channel, feat_channel//2, 1): weight (ch, Cf), bias (ch,)
        "w1": 0.1 * jax.random.normal(k1, (ch, feat_channel), jnp.float32),
        "b1": 0.1 * jax.random.normal(k2, (ch,), jnp.float32),
        # BatchNorm2d(ch): PyTorch defaults
        "bn_gamma": jnp.ones((ch,), jnp.float32),
        "bn_beta": jnp.zeros((ch,), jnp.float32),
        "bn_mean": jnp.zeros((ch,), jnp.float32),
        "bn_var": jnp.ones((ch,), jnp.float32),
        "bn_eps": 1e-5,
        # Conv2d(ch, cv_channel, 1): weight (Ccv, ch), bias (Ccv,)
        "w2": 0.1 * jax.random.normal(k3, (cv_channel, ch), jnp.float32),
        "b2": 0.1 * jax.random.normal(k4, (cv_channel,), jnp.float32),
    }


def _fold_bn(params):
    """Fold eval-mode BatchNorm into conv1; weights oriented channels-first.

    Returns w1m (Ch, Cf), b1m (Ch, 1), w2m (Ccv, Ch), b2m (Ccv, 1) so that
        h   = w1m @ x + b1m          (x is (Cf, N))
        att = sigmoid(w2m @ relu(h) + b2m)
    """
    s = params["bn_gamma"] / jnp.sqrt(params["bn_var"] + params["bn_eps"])  # (Ch,)
    t = params["bn_beta"] - s * params["bn_mean"]                           # (Ch,)
    w1m = params["w1"] * s[:, None]                    # (Ch, Cf)
    b1m = (params["b1"] * s + t)[:, None]              # (Ch, 1)
    w2m = params["w2"]                                 # (Ccv, Ch)
    b2m = params["b2"][:, None]                        # (Ccv, 1)
    return w1m, b1m, w2m, b2m


# ---------------------------------------------------------------------------
# Per-generation VMEM budget and tiling selection
# ---------------------------------------------------------------------------
def _vmem_limit_bytes() -> int:
    """Scoped-VMEM limit derived from the chip (v5e/v6e: 128 MiB physical,
    v7x: 64 MiB per TC). Falls back to a value safe on every generation."""
    try:
        cap = int(pltpu.get_tpu_info().vmem_capacity_bytes)
    except Exception:
        cap = 64 * 1024 * 1024
    return max(32 * 1024 * 1024, min(int(cap * 0.70), 96 * 1024 * 1024))


def _choose_tiling(HW, D, Ccv, Cf, Ch, cv_item, feat_item, budget, tile_hw):
    """Pick (pixel_tile, d_chunk).

    Preference: (1) full-D slab with the largest lane tile (never below 512 here),
    (2) keep the lane tile >= 512 and chunk D (multiples of 8) instead,
    (3) last resort: shrink the lane tile.
    """
    def fits(tile, dc):
        cv_buf = 4 * Ccv * dc * tile * cv_item           # cv in + out, double-buffered
        feat_buf = 2 * Cf * tile * feat_item              # feat in, double-buffered
        att_buf = Ccv * tile * 4                          # attention scratch
        w_buf = 2 * ((Ch * Cf + Ccv * Ch) * feat_item + (Ch + Ccv) * 4)
        return cv_buf + feat_buf + att_buf + w_buf + (1 << 20) <= budget

    if HW < _LANE:
        return HW, D                                      # single tiny full-dim block

    if HW % _LANE == 0:
        lane_cap = min(_round_up(tile_hw, _LANE), HW)
    else:
        # Cap at the largest multiple of 128 <= HW: only the *last* pixel tile is
        # ragged (Pallas drops the out-of-bounds writes; no wrapper pad needed).
        lane_cap = min(_round_up(tile_hw, _LANE), (HW // _LANE) * _LANE)
    lane_pref = min(512, lane_cap)

    # 1) Full-D slab, largest lane tile that fits.
    tile = lane_cap
    while tile - _LANE >= lane_pref and not fits(tile, D):
        tile -= _LANE
    if fits(tile, D):
        return tile, D

    # 2) Chunk the disparity axis (chunks must be multiples of 8 for sublane layout).
    tile = min(tile, lane_pref)
    if D > 8:
        for dc in range((D - 1) // 8 * 8, 7, -8):
            if fits(tile, dc):
                while tile + _LANE <= lane_cap and fits(tile + _LANE, dc):
                    tile += _LANE
                return tile, dc

    # 3) Last resort: shrink the lane tile.
    dc = 8 if D > 8 else D
    while tile > _LANE and not fits(tile, dc):
        tile -= _LANE
    return tile, dc


# ---------------------------------------------------------------------------
# Wrapper
# ---------------------------------------------------------------------------
@functools.partial(jax.jit, static_argnames=("tile_hw", "donate_cv"))
def feature_guided_block(cv, feat, params, *, tile_hw=4096, donate_cv=False):
    """cv: (B, Ccv, D, H, W), feat: (B, Cf, H, W)  ->  (B, Ccv, D, H, W).

    Set donate_cv=True when the caller does not need cv afterwards: the output then
    aliases the cv buffer (halves the HBM footprint of a large cost volume)."""
    B, Ccv, D, H, W = cv.shape
    _, Cf, _, _ = feat.shape
    Ch = Cf // 2
    HW = H * W

    w1m, b1m, w2m, b2m = _fold_bn(params)
    # Matmuls run in the feature dtype (bf16-native MXU when feat is bf16);
    # biases and accumulation stay in f32.
    w1m = w1m.astype(feat.dtype)
    w2m = w2m.astype(feat.dtype)
    b1m = b1m.astype(jnp.float32)
    b2m = b2m.astype(jnp.float32)

    cv_item = jnp.dtype(cv.dtype).itemsize
    feat_item = jnp.dtype(feat.dtype).itemsize
    vmem_limit = _vmem_limit_bytes()
    tile, dc = _choose_tiling(HW, D, Ccv, Cf, Ch, cv_item, feat_item,
                              int(vmem_limit * 0.85), tile_hw)

    n_p = _cdiv(HW, tile)
    # v7x megacore balance: keep the number of parallel grid steps even when cheap.
    if n_p > 1 and (B * n_p) % 2 == 1:
        for t in range(tile - _LANE, 511, -_LANE):
            if (B * _cdiv(HW, t)) % 2 == 0:
                tile = t
                n_p = _cdiv(HW, tile)
                break
    n_d = _cdiv(D, dc)

    # Free trailing reshapes only — no pad, no transpose, no post-call slice.
    feat_flat = feat.reshape(B, Cf, HW)
    cv_flat = cv.reshape(B, Ccv, D, HW)

    cost = pl.CostEstimate(
        flops=2 * B * HW * (Cf * Ch + Ch * Ccv) + 2 * B * HW * D * Ccv,
        transcendentals=B * HW * Ccv,
        bytes_accessed=2 * cv.size * cv_item + feat.size * feat_item
        + (w1m.size + w2m.size) * feat_item + (b1m.size + b2m.size) * 4,
    )

    out_flat = pl.pallas_call(
        _fgb_kernel,
        out_shape=jax.ShapeDtypeStruct((B, Ccv, D, HW), cv.dtype),
        grid_spec=pltpu.PrefetchScalarGridSpec(
            num_scalar_prefetch=0,
            grid=(B, n_p, n_d),
            in_specs=[
                pl.BlockSpec((1, Cf, tile), lambda b, p, d: (b, 0, p)),
                pl.BlockSpec((Ch, Cf), lambda b, p, d: (0, 0)),
                pl.BlockSpec((Ch, 1), lambda b, p, d: (0, 0)),
                pl.BlockSpec((Ccv, Ch), lambda b, p, d: (0, 0)),
                pl.BlockSpec((Ccv, 1), lambda b, p, d: (0, 0)),
                pl.BlockSpec((1, Ccv, dc, tile), lambda b, p, d: (b, 0, d, p)),
            ],
            out_specs=pl.BlockSpec((1, Ccv, dc, tile), lambda b, p, d: (b, 0, d, p)),
            scratch_shapes=[pltpu.VMEM((Ccv, tile), jnp.float32)],
        ),
        compiler_params=pltpu.CompilerParams(
            dimension_semantics=("parallel", "parallel", "arbitrary"),
            vmem_limit_bytes=vmem_limit,
        ),
        cost_estimate=cost,
        input_output_aliases=({5: 0} if donate_cv else {}),
    )(feat_flat, w1m, b1m, w2m, b2m, cv_flat)

    return out_flat.reshape(B, Ccv, D, H, W)


# ---------------------------------------------------------------------------
# Pure-JAX reference (eval-mode BN)
# ---------------------------------------------------------------------------
def _reference(cv, feat, params):
    w1m, b1m, w2m, b2m = _fold_bn(params)
    B, Cf, H, W = feat.shape
    x = feat.reshape(B, Cf, H * W)                                       # (B, Cf, HW)
    h = jnp.maximum(jnp.einsum("oc,bcn->bon", w1m, x) + b1m[None], 0.0)
    att = jax.nn.sigmoid(jnp.einsum("oc,bcn->bon", w2m, h) + b2m[None])  # (B, Ccv, HW)
    att = att.reshape(B, -1, 1, H, W)                                    # (B, Ccv, 1, H, W)
    return att * cv


if __name__ == "__main__":
    key = jax.random.PRNGKey(0)

    # --- Test 1: small, evenly tiled, f32 -----------------------------------
    B, Ccv, D, H, W, Cf = 2, 4, 8, 16, 16, 8
    k_cv, k_feat, k_p, key = jax.random.split(key, 4)
    cv = jax.random.normal(k_cv, (B, Ccv, D, H, W), jnp.float32)
    feat = jax.random.normal(k_feat, (B, Cf, H, W), jnp.float32)
    params = make_params(cv_channel=Ccv, feat_channel=Cf, key=k_p)
    out = jax.block_until_ready(feature_guided_block(cv, feat, params))
    ref = _reference(cv, feat, params)
    assert out.shape == (B, Ccv, D, H, W)
    assert jnp.allclose(out, ref, atol=1e-5, rtol=1e-5), "f32 mismatch vs reference"

    # --- Test 2: ragged pixel tiling (HW % 128 != 0), f32 --------------------
    B2, Ccv2, D2, H2, W2, Cf2 = 1, 8, 12, 18, 20, 16
    k_cv, k_feat, k_p, key = jax.random.split(key, 4)
    cv2 = jax.random.normal(k_cv, (B2, Ccv2, D2, H2, W2), jnp.float32)
    feat2 = jax.random.normal(k_feat, (B2, Cf2, H2, W2), jnp.float32)
    params2 = make_params(cv_channel=Ccv2, feat_channel=Cf2, key=k_p)
    out2 = jax.block_until_ready(feature_guided_block(cv2, feat2, params2))
    ref2 = _reference(cv2, feat2, params2)
    assert jnp.allclose(out2, ref2, atol=1e-5, rtol=1e-5), "ragged-tile mismatch"

    # --- Test 3: bf16 cost volume / features ---------------------------------
    cv3 = cv.astype(jnp.bfloat16)
    feat3 = feat.astype(jnp.bfloat16)
    out3 = jax.block_until_ready(feature_guided_block(cv3, feat3, params))
    ref3 = _reference(cv3, feat3, params)   # f32 reference
    assert out3.dtype == jnp.bfloat16
    assert jnp.allclose(out3.astype(jnp.float32), ref3, atol=5e-2, rtol=5e-2), \
        "bf16 mismatch vs reference"

    print("KERNEL_OK")
</pallas_src>

<mosaic_0001>
module attributes {stable_mosaic.version = 11 : i64} {
  func.func @_fgb_kernel(%arg0: i32, %arg1: i32, %arg2: i32, %arg3: memref<1x8x256xf32, #tpu.memory_space<vmem>>, %arg4: memref<4x8xf32, #tpu.memory_space<vmem>>, %arg5: memref<4x1xf32, #tpu.memory_space<vmem>>, %arg6: memref<4x4xf32, #tpu.memory_space<vmem>>, %arg7: memref<4x1xf32, #tpu.memory_space<vmem>>, %arg8: memref<1x4x8x256xf32, #tpu.memory_space<vmem>>, %arg9: memref<1x4x8x256xf32, #tpu.memory_space<vmem>>, %arg10: memref<4x256xf32, #tpu.memory_space<vmem>>) attributes {dimension_semantics = [#tpu.dimension_semantics<parallel>, #tpu.dimension_semantics<parallel>, #tpu.dimension_semantics<arbitrary>], iteration_bounds = array<i64: 2, 1, 1>, scalar_prefetch = 0 : i64, scratch_operands = 1 : i64, tpu.core_type = #tpu.core_type<tc>, window_params = [{transform_indices = @transform_0, window_bounds = array<i64: 1, 8, 256>}, {pipeline_mode = #tpu.pipeline_mode<synchronous>, transform_indices = @transform_1, window_bounds = array<i64: 4, 8>}, {pipeline_mode = #tpu.pipeline_mode<synchronous>, transform_indices = @transform_2, window_bounds = array<i64: 4, 1>}, {pipeline_mode = #tpu.pipeline_mode<synchronous>, transform_indices = @transform_3, window_bounds = array<i64: 4, 4>}, {pipeline_mode = #tpu.pipeline_mode<synchronous>, transform_indices = @transform_4, window_bounds = array<i64: 4, 1>}, {transform_indices = @transform_5, window_bounds = array<i64: 1, 4, 8, 256>}, {transform_indices = @transform_6, window_bounds = array<i64: 1, 4, 8, 256>}]} {
    %c0_i32 = arith.constant 0 : i32
    %0 = arith.cmpi eq, %arg2, %c0_i32 : i32
    %1 = arith.extui %0 : i1 to i32
    %c0_i32_0 = arith.constant 0 : i32
    %2 = arith.cmpi ne, %1, %c0_i32_0 : i32
    scf.if %2 {
      %c0_37 = arith.constant 0 : index
      %c0_38 = arith.constant 0 : index
      %c0_39 = arith.constant 0 : index
      %35 = vector.load %arg3[%c0_37, %c0_38, %c0_39] : memref<1x8x256xf32, #tpu.memory_space<vmem>>, vector<1x8x256xf32>
      %36 = vector.shape_cast %35 : vector<1x8x256xf32> to vector<8x256xf32>
      %c0_40 = arith.constant 0 : index
      %c0_41 = arith.constant 0 : index
      %37 = vector.load %arg4[%c0_40, %c0_41] : memref<4x8xf32, #tpu.memory_space<vmem>>, vector<4x8xf32>
      %cst = arith.constant dense<0.000000e+00> : vector<4x256xf32>
      %38 = tpu.matmul %37, %36, %cst {dimension_numbers = #tpu.dot_dimension_numbers<[1], [0], [0], [1], [0, 0, 1, 1], [], []>} : vector<4x8xf32>, vector<8x256xf32>, vector<4x256xf32> -> vector<4x256xf32>
      %c0_42 = arith.constant 0 : index
      %c0_43 = arith.constant 0 : index
      %39 = vector.load %arg5[%c0_42, %c0_43] : memref<4x1xf32, #tpu.memory_space<vmem>>, vector<4x1xf32>
      %40 = vector.broadcast %39 : vector<4x1xf32> to vector<4x256xf32>
      %41 = arith.addf %38, %40 : vector<4x256xf32>
      %cst_44 = arith.constant 0.000000e+00 : f32
      %42 = vector.broadcast %cst_44 : f32 to vector<4x256xf32>
      %43 = arith.maximumf %41, %42 : vector<4x256xf32>
      %c0_45 = arith.constant 0 : index
      %c0_46 = arith.constant 0 : index
      %44 = vector.load %arg6[%c0_45, %c0_46] : memref<4x4xf32, #tpu.memory_space<vmem>>, vector<4x4xf32>
      %cst_47 = arith.constant dense<0.000000e+00> : vector<4x256xf32>
      %45 = tpu.matmul %44, %43, %cst_47 {dimension_numbers = #tpu.dot_dimension_numbers<[1], [0], [0], [1], [0, 0, 1, 1], [], []>} : vector<4x4xf32>, vector<4x256xf32>, vector<4x256xf32> -> vector<4x256xf32>
      %c0_48 = arith.constant 0 : index
      %c0_49 = arith.constant 0 : index
      %46 = vector.load %arg7[%c0_48, %c0_49] : memref<4x1xf32, #tpu.memory_space<vmem>>, vector<4x1xf32>
      %47 = vector.broadcast %46 : vector<4x1xf32> to vector<4x256xf32>
      %48 = arith.addf %45, %47 : vector<4x256xf32>
      %49 = arith.negf %48 : vector<4x256xf32>
      %50 = math.exp %49 : vector<4x256xf32>
      %cst_50 = arith.constant 1.000000e+00 : f32
      %51 = vector.broadcast %cst_50 : f32 to vector<4x256xf32>
      %52 = arith.addf %51, %50 : vector<4x256xf32>
      %53 = arith.divf %51, %52 : vector<4x256xf32>
      %c0_51 = arith.constant 0 : index
      %c0_52 = arith.constant 0 : index
      %54 = vector.load %arg10[%c0_51, %c0_52] : memref<4x256xf32, #tpu.memory_space<vmem>>, vector<4x256xf32>
      tpu.vector_store %arg10[%c0_51, %c0_52], %53 {strides = array<i32>} : memref<4x256xf32, #tpu.memory_space<vmem>>, vector<4x256xf32>,
    } else {
    }
    %c0 = arith.constant 0 : index
    %c0_1 = arith.constant 0 : index
    %3 = vector.load %arg10[%c0, %c0_1] : memref<4x256xf32, #tpu.memory_space<vmem>>, vector<1x256xf32>
    %c0_2 = arith.constant 0 : index
    %c0_3 = arith.constant 0 : index
    %c0_4 = arith.constant 0 : index
    %c0_5 = arith.constant 0 : index
    %4 = vector.load %arg8[%c0_2, %c0_3, %c0_4, %c0_5] : memref<1x4x8x256xf32, #tpu.memory_space<vmem>>, vector<1x1x8x256xf32>
    %5 = vector.shape_cast %4 : vector<1x1x8x256xf32> to vector<8x256xf32>
    %6 = vector.broadcast %3 : vector<1x256xf32> to vector<8x256xf32>
    %7 = arith.mulf %6, %5 : vector<8x256xf32>
    %c0_6 = arith.constant 0 : index
    %c0_7 = arith.constant 0 : index
    %c0_8 = arith.constant 0 : index
    %c0_9 = arith.constant 0 : index
    %8 = vector.load %arg9[%c0_6, %c0_7, %c0_8, %c0_9] : memref<1x4x8x256xf32, #tpu.memory_space<vmem>>, vector<1x1x8x256xf32>
    %9 = vector.shape_cast %8 : vector<1x1x8x256xf32> to vector<8x256xf32>
    %10 = vector.shape_cast %7 : vector<8x256xf32> to vector<1x1x8x256xf32>
    tpu.vector_store %arg9[%c0_6, %c0_7, %c0_8, %c0_9], %10 {strides = array<i32>} : memref<1x4x8x256xf32, #tpu.memory_space<vmem>>, vector<1x1x8x256xf32>,
    %c1 = arith.constant 1 : index
    %c0_10 = arith.constant 0 : index
    %11 = vector.load %arg10[%c1, %c0_10] : memref<4x256xf32, #tpu.memory_space<vmem>>, vector<1x256xf32>
    %c0_11 = arith.constant 0 : index
    %c1_12 = arith.constant 1 : index
    %c0_13 = arith.constant 0 : index
    %c0_14 = arith.constant 0 : index
    %12 = vector.load %arg8[%c0_11, %c1_12, %c0_13, %c0_14] : memref<1x4x8x256xf32, #tpu.memory_space<vmem>>, vector<1x1x8x256xf32>
    %13 = vector.shape_cast %12 : vector<1x1x8x256xf32> to vector<8x256xf32>
    %14 = vector.broadcast %11 : vector<1x256xf32> to vector<8x256xf32>
    %15 = arith.mulf %14, %13 : vector<8x256xf32>
    %c0_15 = arith.constant 0 : index
    %c1_16 = arith.constant 1 : index
    %c0_17 = arith.constant 0 : index
    %c0_18 = arith.constant 0 : index
    %16 = vector.load %arg9[%c0_15, %c1_16, %c0_17, %c0_18] : memref<1x4x8x256xf32, #tpu.memory_space<vmem>>, vector<1x1x8x256xf32>
    %17 = vector.shape_cast %16 : vector<1x1x8x256xf32> to vector<8x256xf32>
    %18 = vector.shape_cast %15 : vector<8x256xf32> to vector<1x1x8x256xf32>
    tpu.vector_store %arg9[%c0_15, %c1_16, %c0_17, %c0_18], %18 {strides = array<i32>} : memref<1x4x8x256xf32, #tpu.memory_space<vmem>>, vector<1x1x8x256xf32>,
    %c2 = arith.constant 2 : index
    %c0_19 = arith.constant 0 : index
    %19 = vector.load %arg10[%c2, %c0_19] : memref<4x256xf32, #tpu.memory_space<vmem>>, vector<1x256xf32>
    %c0_20 = arith.constant 0 : index
    %c2_21 = arith.constant 2 : index
    %c0_22 = arith.constant 0 : index
    %c0_23 = arith.constant 0 : index
    %20 = vector.load %arg8[%c0_20, %c2_21, %c0_22, %c0_23] : memref<1x4x8x256xf32, #tpu.memory_space<vmem>>, vector<1x1x8x256xf32>
    %21 = vector.shape_cast %20 : vector<1x1x8x256xf32> to vector<8x256xf32>
    %22 = vector.broadcast %19 : vector<1x256xf32> to vector<8x256xf32>
    %23 = arith.mulf %22, %21 : vector<8x256xf32>
    %c0_24 = arith.constant 0 : index
    %c2_25 = arith.constant 2 : index
    %c0_26 = arith.constant 0 : index
    %c0_27 = arith.constant 0 : index
    %24 = vector.load %arg9[%c0_24, %c2_25, %c0_26, %c0_27] : memref<1x4x8x256xf32, #tpu.memory_space<vmem>>, vector<1x1x8x256xf32>
    %25 = vector.shape_cast %24 : vector<1x1x8x256xf32> to vector<8x256xf32>
    %26 = vector.shape_cast %23 : vector<8x256xf32> to vector<1x1x8x256xf32>
    tpu.vector_store %arg9[%c0_24, %c2_25, %c0_26, %c0_27], %26 {strides = array<i32>} : memref<1x4x8x256xf32, #tpu.memory_space<vmem>>, vector<1x1x8x256xf32>,
    %c3 = arith.constant 3 : index
    %c0_28 = arith.constant 0 : index
    %27 = vector.load %arg10[%c3, %c0_28] : memref<4x256xf32, #tpu.memory_space<vmem>>, vector<1x256xf32>
    %c0_29 = arith.constant 0 : index
    %c3_30 = arith.constant 3 : index
    %c0_31 = arith.constant 0 : index
    %c0_32 = arith.constant 0 : index
    %28 = vector.load %arg8[%c0_29, %c3_30, %c0_31, %c0_32] : memref<1x4x8x256xf32, #tpu.memory_space<vmem>>, vector<1x1x8x256xf32>
    %29 = vector.shape_cast %28 : vector<1x1x8x256xf32> to vector<8x256xf32>
    %30 = vector.broadcast %27 : vector<1x256xf32> to vector<8x256xf32>
    %31 = arith.mulf %30, %29 : vector<8x256xf32>
    %c0_33 = arith.constant 0 : index
    %c3_34 = arith.constant 3 : index
    %c0_35 = arith.constant 0 : index
    %c0_36 = arith.constant 0 : index
    %32 = vector.load %arg9[%c0_33, %c3_34, %c0_35, %c0_36] : memref<1x4x8x256xf32, #tpu.memory_space<vmem>>, vector<1x1x8x256xf32>
    %33 = vector.shape_cast %32 : vector<1x1x8x256xf32> to vector<8x256xf32>
    %34 = vector.shape_cast %31 : vector<8x256xf32> to vector<1x1x8x256xf32>
    tpu.vector_store %arg9[%c0_33, %c3_34, %c0_35, %c0_36], %34 {strides = array<i32>} : memref<1x4x8x256xf32, #tpu.memory_space<vmem>>, vector<1x1x8x256xf32>,
    return
  }
  func.func @transform_0(%arg0: i32, %arg1: i32, %arg2: i32) -> (i32, i32, i32) {
    %c0_i32 = arith.constant 0 : i32
    %c0_i32_0 = arith.constant 0 : i32
    return %arg0, %c0_i32, %arg1 : i32, i32, i32
  }
  func.func @transform_1(%arg0: i32, %arg1: i32, %arg2: i32) -> (i32, i32) {
    %c0_i32 = arith.constant 0 : i32
    %c0_i32_0 = arith.constant 0 : i32
    %c0_i32_1 = arith.constant 0 : i32
    return %c0_i32, %c0_i32_0 : i32, i32
  }
  func.func @transform_2(%arg0: i32, %arg1: i32, %arg2: i32) -> (i32, i32) {
    %c0_i32 = arith.constant 0 : i32
    %c0_i32_0 = arith.constant 0 : i32
    %c0_i32_1 = arith.constant 0 : i32
    return %c0_i32, %c0_i32_0 : i32, i32
  }
  func.func @transform_3(%arg0: i32, %arg1: i32, %arg2: i32) -> (i32, i32) {
    %c0_i32 = arith.constant 0 : i32
    %c0_i32_0 = arith.constant 0 : i32
    %c0_i32_1 = arith.constant 0 : i32
    return %c0_i32, %c0_i32_0 : i32, i32
  }
  func.func @transform_4(%arg0: i32, %arg1: i32, %arg2: i32) -> (i32, i32) {
    %c0_i32 = arith.constant 0 : i32
    %c0_i32_0 = arith.constant 0 : i32
    %c0_i32_1 = arith.constant 0 : i32
    return %c0_i32, %c0_i32_0 : i32, i32
  }
  func.func @transform_5(%arg0: i32, %arg1: i32, %arg2: i32) -> (i32, i32, i32, i32) {
    %c0_i32 = arith.constant 0 : i32
    %c0_i32_0 = arith.constant 0 : i32
    return %arg0, %c0_i32, %arg2, %arg1 : i32, i32, i32, i32
  }
  func.func @transform_6(%arg0: i32, %arg1: i32, %arg2: i32) -> (i32, i32, i32, i32) {
    %c0_i32 = arith.constant 0 : i32
    %c0_i32_0 = arith.constant 0 : i32
    return %arg0, %c0_i32, %arg2, %arg1 : i32, i32, i32, i32
  }
}

</mosaic_0001>

<llo_original>
// kernel: feature_guided_block.1
$region0: #{feature_guided_block.1}
  #allocation0 [shape = 'u32[]', space=smem, size = 0x4, offset = 0x4, fixed_abs, tag = 'smem constant byte address 0x4 - core index']
  #allocation1 [shape = 'u32[72,128]{1,0:T(1,128)}', space=vmem, size = 0x9000, scoped, tag = 'internal scratch']
  #allocation2 [shape = 'f32[4,256]{1,0:T(4,128)}', space=vmem, size = 0x1000, scoped, tag = 'scratch operand']
  %s0 = inlined_call_operand.vmem [shape: f32[2,8,256], index: 0, kind: input, shape index: {}]
  %s1 = inlined_call_operand.vmem [shape: f32[4,8], index: 1, kind: input, shape index: {}]
  %s2 = inlined_call_operand.vmem [shape: f32[4,1], index: 2, kind: input, shape index: {}]
  %s3 = inlined_call_operand.vmem [shape: f32[4,4], index: 3, kind: input, shape index: {}]
  %s4 = inlined_call_operand.vmem [shape: f32[4,1], index: 4, kind: input, shape index: {}]
  %s5 = inlined_call_operand.vmem [shape: f32[2,4,8,256], index: 5, kind: input, shape index: {}]
  %s6 = inlined_call_operand.vmem [shape: f32[2,4,8,256], index: 6, kind: output, shape index: {}]
  %s7 = sld [smem:[#allocation0]]
  $region61: #{feature_guided_block.1} parent=0
    _
  %s9 = ssub.s32 1, %s7
  %s10 = scalar_select 0, %s9, %s7
  loop: start=0, step=1, limit=4
  $region2: #{feature_guided_block.1} parent=0 // loop_pre_header
    _
  $region3: #{feature_guided_block.1} parent=0 // loop_header
    %s12 = sphi 0, %s16
    %p13 = scmp.ge.s32.totalorder %s12, 4
    %s19 = sphi 0, %s38
    %s20 = sphi 0, %s34
    %s21 = sphi 0, %s30
    %s22 = sphi 0, %s19
    %s23 = sphi 0, %s20
    %s24 = sphi 0, %s21
    %s25 = sphi 0, %s22
    %s26 = sphi 0, %s23
    %s27 = sphi 0, %s24
    %s43 = sphi 0, %s45
    %s46 = sphi 0, %s43
    %s47 = sphi 0, %s46
    %s63 = sphi 0, %s47
    %s67 = sphi 0, %s67
    %s69 = sphi 0, %s67
    %s70 = sphi 0, %s69
    %s84 = sphi 0, %s70
    %s88 = sphi 0, %s88
    %s90 = sphi 0, %s88
    %s91 = sphi 0, %s90
    %s105 = sphi 0, %s91
    %s109 = sphi 0, %s109
    %s111 = sphi 0, %s109
    %s112 = sphi 0, %s111
    %s126 = sphi 0, %s112
    %s130 = sphi 0, %s130
    %s132 = sphi 0, %s130
    %s133 = sphi 0, %s132
    %s147 = sphi 0, %s133
    %s157 = sphi 0, %s159
    %s160 = sphi 0, %s157
    %s161 = sphi 0, %s160
    %s177 = sphi 0, %s161
    %s187 = sphi 0, %s189
    %s190 = sphi 0, %s187
    %s191 = sphi 0, %s190
    %s207 = sphi 0, %s191
  $region4: #{feature_guided_block.1} parent=0 // loop_header_branch
    %15 = sbr.rel (%p13) target = $region8
  $region5: #{feature_guided_block.1} parent=0 // loop_body
    %s17 = ssub.s32 %s12, 1
    %s18 = ssub.s32 %s12, 2
    %s28 = sadd.s32 1, %s21
    %p29 = scmp.ge.s32.totalorder %s28, 1
    %s30 = scalar_select %p29, 0, %s28
    %s31 = sadd.s32 1, %s20
    %s32 = scalar_select %p29, %s31, %s20
    %p33 = scmp.ge.s32.totalorder %s32, 1
    %s34 = scalar_select %p33, 0, %s32
    %s35 = sadd.s32 1, %s19
    %s36 = scalar_select %p33, %s35, %s19
    %p37 = scmp.ge.s32.totalorder %s36, 2
    %s38 = scalar_select %p37, 0, %s36
    %s39 = ssub.s32 %s19, %s38
    %s40 = ssub.s32 %s20, %s34
    %s41 = sor.u32 %s39, %s40
    %p42 = scmp.eq.s32.totalorder %s41, 0
    %s44 = sadd.s32 %s43, 1
    %s45 = scalar_select %p42, %s43, %s44
    %p48 = pneg %p42
    %p49 = scmp.eq.s32.totalorder %s12, 1
    %p50 = por %p48, %p49
    %p51 = scmp.ne.s32.totalorder %s43, %s46
    %p52 = scmp.eq.s32.totalorder %s12, 0
    %p53 = por %p51, %p52
    %p54 = scmp.ne.s32.totalorder %s43, %s46
    %p55 = scmp.eq.s32.totalorder %s17, 1
    %p56 = por %p54, %p55
    %p57 = scmp.ne.s32.totalorder %s46, %s47
    %p58 = scmp.eq.s32.totalorder %s17, 0
    %p59 = por %p57, %p58
    %p60 = scmp.ne.s32.totalorder %s46, %s47
    %p61 = scmp.eq.s32.totalorder %s18, 1
    %p62 = por %p60, %p61
    %p64 = scmp.ne.s32.totalorder %s47, %s63
    %p65 = scmp.eq.s32.totalorder %s18, 0
    %p66 = por %p64, %p65
    %s68 = sadd.s32 %s67, 1
    %p71 = scmp.eq.s32.totalorder %s12, 1
    %p72 = scmp.ne.s32.totalorder %s67, %s69
    %p73 = scmp.eq.s32.totalorder %s12, 0
    %p74 = por %p72, %p73
    %p75 = scmp.ne.s32.totalorder %s67, %s69
    %p76 = scmp.eq.s32.totalorder %s17, 1
    %p77 = por %p75, %p76
    %p78 = scmp.ne.s32.totalorder %s69, %s70
    %p79 = scmp.eq.s32.totalorder %s17, 0
    %p80 = por %p78, %p79
    %p81 = scmp.ne.s32.totalorder %s69, %s70
    %p82 = scmp.eq.s32.totalorder %s18, 1
    %p83 = por %p81, %p82
    %p85 = scmp.ne.s32.totalorder %s70, %s84
    %p86 = scmp.eq.s32.totalorder %s18, 0
    %p87 = por %p85, %p86
    %s89 = sadd.s32 %s88, 1
    %p92 = scmp.eq.s32.totalorder %s12, 1
    %p93 = scmp.ne.s32.totalorder %s88, %s90
    %p94 = scmp.eq.s32.totalorder %s12, 0
    %p95 = por %p93, %p94
    %p96 = scmp.ne.s32.totalorder %s88, %s90
    %p97 = scmp.eq.s32.totalorder %s17, 1
    %p98 = por %p96, %p97
    %p99 = scmp.ne.s32.totalorder %s90, %s91
    %p100 = scmp.eq.s32.totalorder %s17, 0
    %p101 = por %p99, %p100
    %p102 = scmp.ne.s32.totalorder %s90, %s91
    %p103 = scmp.eq.s32.totalorder %s18, 1
    %p104 = por %p102, %p103
    %p106 = scmp.ne.s32.totalorder %s91, %s105
    %p107 = scmp.eq.s32.totalorder %s18, 0
    %p108 = por %p106, %p107
    %s110 = sadd.s32 %s109, 1
    %p113 = scmp.eq.s32.totalorder %s12, 1
    %p114 = scmp.ne.s32.totalorder %s109, %s111
    %p115 = scmp.eq.s32.totalorder %s12, 0
    %p116 = por %p114, %p115
    %p117 = scmp.ne.s32.totalorder %s109, %s111
    %p118 = scmp.eq.s32.totalorder %s17, 1
    %p119 = por %p117, %p118
    %p120 = scmp.ne.s32.totalorder %s111, %s112
    %p121 = scmp.eq.s32.totalorder %s17, 0
    %p122 = por %p120, %p121
    %p123 = scmp.ne.s32.totalorder %s111, %s112
    %p124 = scmp.eq.s32.totalorder %s18, 1
    %p125 = por %p123, %p124
    %p127 = scmp.ne.s32.totalorder %s112, %s126
    %p128 = scmp.eq.s32.totalorder %s18, 0
    %p129 = por %p127, %p128
    %s131 = sadd.s32 %s130, 1
    %p134 = scmp.eq.s32.totalorder %s12, 1
    %p135 = scmp.ne.s32.totalorder %s130, %s132
    %p136 = scmp.eq.s32.totalorder %s12, 0
    %p137 = por %p135, %p136
    %p138 = scmp.ne.s32.totalorder %s130, %s132
    %p139 = scmp.eq.s32.totalorder %s17, 1
    %p140 = por %p138, %p139
    %p141 = scmp.ne.s32.totalorder %s132, %s133
    %p142 = scmp.eq.s32.totalorder %s17, 0
    %p143 = por %p141, %p142
    %p144 = scmp.ne.s32.totalorder %s132, %s133
    %p145 = scmp.eq.s32.totalorder %s18, 1
    %p146 = por %p144, %p145
    %p148 = scmp.ne.s32.totalorder %s133, %s147
    %p149 = scmp.eq.s32.totalorder %s18, 0
    %p150 = por %p148, %p149
    %s151 = ssub.s32 %s19, %s38
    %s152 = ssub.s32 %s21, %s30
    %s153 = sor.u32 %s151, %s152
    %s154 = ssub.s32 %s20, %s34
    %s155 = sor.u32 %s153, %s154
    %p156 = scmp.eq.s32.totalorder %s155, 0
    %s158 = sadd.s32 %s157, 1
    %s159 = scalar_select %p156, %s157, %s158
    %p162 = pneg %p156
    %p163 = scmp.eq.s32.totalorder %s12, 1
    %p164 = por %p162, %p163
    %p165 = scmp.ne.s32.totalorder %s157, %s160
    %p166 = scmp.eq.s32.totalorder %s12, 0
    %p167 = por %p165, %p166
    %p168 = scmp.ne.s32.totalorder %s157, %s160
    %p169 = scmp.eq.s32.totalorder %s17, 1
    %p170 = por %p168, %p169
    %p171 = scmp.ne.s32.totalorder %s160, %s161
    %p172 = scmp.eq.s32.totalorder %s17, 0
    %p173 = por %p171, %p172
    %p174 = scmp.ne.s32.totalorder %s160, %s161
    %p175 = scmp.eq.s32.totalorder %s18, 1
    %p176 = por %p174, %p175
    %p178 = scmp.ne.s32.totalorder %s161, %s177
    %p179 = scmp.eq.s32.totalorder %s18, 0
    %p180 = por %p178, %p179
    %s181 = ssub.s32 %s19, %s38
    %s182 = ssub.s32 %s21, %s30
    %s183 = sor.u32 %s181, %s182
    %s184 = ssub.s32 %s20, %s34
    %s185 = sor.u32 %s183, %s184
    %p186 = scmp.eq.s32.totalorder %s185, 0
    %s188 = sadd.s32 %s187, 1
    %s189 = scalar_select %p186, %s187, %s188
    %p192 = pneg %p186
    %p193 = scmp.eq.s32.totalorder %s12, 1
    %p194 = por %p192, %p193
    %p195 = scmp.ne.s32.totalorder %s187, %s190
    %p196 = scmp.eq.s32.totalorder %s12, 0
    %p197 = por %p195, %p196
    %p198 = scmp.ne.s32.totalorder %s187, %s190
    %p199 = scmp.eq.s32.totalorder %s17, 1
    %p200 = por %p198, %p199
    %p201 = scmp.ne.s32.totalorder %s190, %s191
    %p202 = scmp.eq.s32.totalorder %s17, 0
    %p203 = por %p201, %p202
    %p204 = scmp.ne.s32.totalorder %s190, %s191
    %p205 = scmp.eq.s32.totalorder %s18, 1
    %p206 = por %p204, %p205
    %p208 = scmp.ne.s32.totalorder %s191, %s207
    %p209 = scmp.eq.s32.totalorder %s18, 0
    %p210 = por %p208, %p209
    %p211 = scmp.le.s32.totalorder 1, %s12
    %p212 = scmp.lt.s32.totalorder %s12, 3
    %p213 = pnand %p211, %p212
    %p214 = pneg %p213
    // Predicated region
    $region9: #{feature_guided_block.1} parent=5 // pred_check
      _
    $region10: #{feature_guided_block.1} parent=5 // pred_check_branch
      %216 = sbr.rel (%p213) target = $region12
    $region11: #{feature_guided_block.1} parent=5 // pred_region
      %s217 = ssub.s32 %s12, 1
      // Predicated region
      $region13: #{feature_guided_block.1} parent=11 // pred_check
        %p218 = pneg %p80
      $region14: #{feature_guided_block.1} parent=11 // pred_check_branch
        %220 = sbr.rel (%p218) target = $region16
      $region15: #{feature_guided_block.1} parent=11 // pred_region
        _
      $region16: #{feature_guided_block.1} parent=11 // pred_fallthru
        _
      // Predicated region
      $region17: #{feature_guided_block.1} parent=11 // pred_check
        %p221 = pneg %p101
      $region18: #{feature_guided_block.1} parent=11 // pred_check_branch
        %223 = sbr.rel (%p221) target = $region20
      $region19: #{feature_guided_block.1} parent=11 // pred_region
        _
      $region20: #{feature_guided_block.1} parent=11 // pred_fallthru
        _
      // Predicated region
      $region21: #{feature_guided_block.1} parent=11 // pred_check
        %p224 = pneg %p122
      $region22: #{feature_guided_block.1} parent=11 // pred_check_branch
        %226 = sbr.rel (%p224) target = $region24
      $region23: #{feature_guided_block.1} parent=11 // pred_region
        _
      $region24: #{feature_guided_block.1} parent=11 // pred_fallthru
        _
      // Predicated region
      $region25: #{feature_guided_block.1} parent=11 // pred_check
        %p227 = pneg %p143
      $region26: #{feature_guided_block.1} parent=11 // pred_check_branch
        %229 = sbr.rel (%p227) target = $region28
      $region27: #{feature_guided_block.1} parent=11 // pred_region
        _
      $region28: #{feature_guided_block.1} parent=11 // pred_fallthru
        _
    $region12: #{feature_guided_block.1} parent=5 // pred_fallthru
      _
    %p230 = scmp.lt.s32.totalorder %s12, 2
    // Predicated region
    $region29: #{feature_guided_block.1} parent=5 // pred_check
      %p231 = pneg %p230
    $region30: #{feature_guided_block.1} parent=5 // pred_check_branch
      %233 = sbr.rel (%p231) target = $region32
    $region31: #{feature_guided_block.1} parent=5 // pred_region
      // Predicated region
      $region33: #{feature_guided_block.1} parent=31 // pred_check
        %p234 = pneg %p53
      $region34: #{feature_guided_block.1} parent=31 // pred_check_branch
        %236 = sbr.rel (%p234) target = $region36
      $region35: #{feature_guided_block.1} parent=31 // pred_region
        %s237 = smul.u32 2, %s20
        %p238 = scmp.lt.s32.totalorder %s19, 1
        %s239 = scalar_select %p238, %s19, 1
        %p240 = scmp.lt.s32.totalorder %s237, 1
        %s241 = scalar_select %p240, %s237, 1
        %s242 = smul.addr %s239, 2
        %s243 = sadd.s32 %s241, %s242
        %s244 = smul.addr %s243, 8
        %s245 = scalar_lea.vmem %s0, %s244
        %s246 = smul.u32 2, %s20
      $region36: #{feature_guided_block.1} parent=31 // pred_fallthru
        _
      // Predicated region
      $region37: #{feature_guided_block.1} parent=31 // pred_check
        %p247 = pneg %p167
      $region38: #{feature_guided_block.1} parent=31 // pred_check_branch
        %249 = sbr.rel (%p247) target = $region40
      $region39: #{feature_guided_block.1} parent=31 // pred_region
        %s250 = smul.u32 2, %s20
        %p251 = scmp.lt.s32.totalorder %s19, 1
        %s252 = scalar_select %p251, %s19, 1
        %p253 = scmp.lt.s32.totalorder %s21, 0
        %s254 = scalar_select %p253, %s21, 0
        %p255 = scmp.lt.s32.totalorder %s250, 1
        %s256 = scalar_select %p255, %s250, 1
        %s257 = smul.addr %s254, 2
        %s258 = sadd.s32 %s256, %s257
        %s259 = smul.addr %s252, 8
        %s260 = sadd.s32 %s258, %s259
        %s261 = smul.addr %s260, 8
        %s262 = scalar_lea.vmem %s5, %s261
        %s263 = smul.u32 2, %s20
      $region40: #{feature_guided_block.1} parent=31 // pred_fallthru
        _
    $region32: #{feature_guided_block.1} parent=5 // pred_fallthru
      _
    %p264 = scmp.le.s32.totalorder 1, %s12
    %p265 = scmp.lt.s32.totalorder %s12, 3
    %p266 = pnand %p264, %p265
    %p267 = pneg %p266
    // Predicated region
    $region41: #{feature_guided_block.1} parent=5 // pred_check
      _
    $region42: #{feature_guided_block.1} parent=5 // pred_check_branch
      %269 = sbr.rel (%p266) target = $region44
    $region43: #{feature_guided_block.1} parent=5 // pred_region
      %s270 = ssub.s32 %s12, 1
      %s271 = smul.u32 2, %s23
      %p272 = scmp.lt.s32.totalorder %s22, 1
      %s273 = scalar_select %p272, %s22, 1
      %p274 = scmp.lt.s32.totalorder %s271, 1
      %s275 = scalar_select %p274, %s271, 1
      %s276 = smul.addr %s273, 2
      %s277 = sadd.s32 %s275, %s276
      %s278 = smul.addr %s277, 8
      %s279 = scalar_lea.vmem %s0, %s278
      %p280 = pneg %p59
      %p281 = pneg %p56
      %p282 = pneg %p80
      %p283 = pneg %p77
      %p284 = pneg %p101
      %p285 = pneg %p98
      %p286 = pneg %p122
      %p287 = pneg %p119
      %p288 = pneg %p143
      %p289 = pneg %p140
      %s290 = smul.u32 2, %s23
      %p291 = scmp.lt.s32.totalorder %s22, 1
      %s292 = scalar_select %p291, %s22, 1
      %p293 = scmp.lt.s32.totalorder %s24, 0
      %s294 = scalar_select %p293, %s24, 0
      %p295 = scmp.lt.s32.totalorder %s290, 1
      %s296 = scalar_select %p295, %s290, 1
      %s297 = smul.addr %s294, 2
      %s298 = sadd.s32 %s296, %s297
      %s299 = smul.addr %s292, 8
      %s300 = sadd.s32 %s298, %s299
      %s301 = smul.addr %s300, 8
      %s302 = scalar_lea.vmem %s5, %s301
      %p303 = pneg %p173
      %p304 = pneg %p170
      %p305 = pneg %p203
      %p306 = pneg %p200
      %s307 = smul.u32 2, %s23
      %p308 = scmp.lt.s32.totalorder %s22, 1
      %s309 = scalar_select %p308, %s22, 1
      %p310 = scmp.lt.s32.totalorder %s24, 0
      %s311 = scalar_select %p310, %s24, 0
      %p312 = scmp.lt.s32.totalorder %s307, 1
      %s313 = scalar_select %p312, %s307, 1
      %s314 = smul.addr %s311, 2
      %s315 = sadd.s32 %s313, %s314
      %s316 = smul.addr %s309, 8
      %s317 = sadd.s32 %s315, %s316
      %s318 = smul.addr %s317, 8
      %s319 = scalar_lea.vmem %s6, %s318
      %s320 = smul.u32 2, %s23
      %p321 = scmp.lt.s32.totalorder %s22, 1
      %s322 = scalar_select %p321, %s22, 1
      %p323 = scmp.lt.s32.totalorder %s320, 1
      %s324 = scalar_select %p323, %s320, 1
      %s325 = smul.addr %s322, 2
      %s326 = sadd.s32 %s324, %s325
      %s327 = smul.addr %s326, 8
      %s328 = scalar_lea.vmem %s0, %s327
      %s329 = smul.u32 2, %s23
      %s330 = smul.u32 2, %s23
      %p331 = scmp.lt.s32.totalorder %s22, 1
      %s332 = scalar_select %p331, %s22, 1
      %p333 = scmp.lt.s32.totalorder %s24, 0
      %s334 = scalar_select %p333, %s24, 0
      %p335 = scmp.lt.s32.totalorder %s330, 1
      %s336 = scalar_select %p335, %s330, 1
      %s337 = smul.addr %s334, 2
      %s338 = sadd.s32 %s336, %s337
      %s339 = smul.addr %s332, 8
      %s340 = sadd.s32 %s338, %s339
      %s341 = smul.addr %s340, 8
      %s342 = scalar_lea.vmem %s5, %s341
      %s343 = smul.u32 2, %s23
      %s344 = smul.u32 2, %s23
      %p345 = scmp.lt.s32.totalorder %s22, 1
      %s346 = scalar_select %p345, %s22, 1
      %p347 = scmp.lt.s32.totalorder %s24, 0
      %s348 = scalar_select %p347, %s24, 0
      %p349 = scmp.lt.s32.totalorder %s344, 1
      %s350 = scalar_select %p349, %s344, 1
      %s351 = smul.addr %s348, 2
      %s352 = sadd.s32 %s350, %s351
      %s353 = smul.addr %s346, 8
      %s354 = sadd.s32 %s352, %s353
      %s355 = smul.addr %s354, 8
      %s356 = scalar_lea.vmem %s6, %s355
      %s357 = smul.u32 2, %s23
      %p358 = scmp.eq.s32.totalorder %s24, 0
      // Predicated region
      $region45: #{feature_guided_block.1} parent=43 // pred_check
        %p359 = pneg %p358
      $region46: #{feature_guided_block.1} parent=43 // pred_check_branch
        %361 = sbr.rel (%p359) target = $region48
      $region47: #{feature_guided_block.1} parent=43 // pred_region
        %v362 = vld [vmem:[%s328] sm:$0xff]
        %v363 = vld [vmem:[%s328 + $0x8] sm:$0xff]
        %v364 = vld [vmem:[%s1] sm:$0xf]
        %v365 = vld [vmem:[%s2] sm:$0xf]
        %367 = vset.pattern.permute.xlu0 0
        %368 = vperm.xlu0 %367, %v365
        %v369 = vpop.permute.xlu0 %368
        %vm371 = vcmask 64512
        %v373 = vsel %vm371, %v364, 0
        %375 = vmatpush.msra.mxu0 0.0
        %376 = vmatpush.msra.mxu0 0.0
        %377 = vmatpush.msra.mxu0 0.0
        %378 = vmatpush.msra.mxu0 0.0
        %379 = vmatpush.msra.mxu0 0.0
        %380 = vmatpush.msra.mxu0 0.0
        %381 = vmatpush.msra.mxu0 0.0
        %382 = vmatpush.msra.mxu0 0.0
        %383 = vmatpush.msra.mxu0 0.0
        %384 = vmatpush.msra.mxu0 0.0
        %385 = vmatpush.msra.mxu0 0.0
        %386 = vmatpush.msra.mxu0 0.0
        %387 = vmatpush.msra.mxu0 0.0
        %388 = vmatpush.msra.mxu0 0.0
        %389 = vmatpush.msra.mxu0 0.0
        %390 = vmatpush.msra.mxu0 %v362
        %391 = vmatmul.f32.gmra.mxu0 %v373
        %v392 = vpop.f32.mrf.mxu0
        %v393 = vadd.f32 %v369, %v392
        %394 = vdwg.mxu0
        %395 = vmatpush.msra.mxu0 0.0
        %396 = vmatpush.msra.mxu0 0.0
        %397 = vmatpush.msra.mxu0 0.0
        %398 = vmatpush.msra.mxu0 0.0
        %399 = vmatpush.msra.mxu0 0.0
        %400 = vmatpush.msra.mxu0 0.0
        %401 = vmatpush.msra.mxu0 0.0
        %402 = vmatpush.msra.mxu0 0.0
        %403 = vmatpush.msra.mxu0 0.0
        %404 = vmatpush.msra.mxu0 0.0
        %405 = vmatpush.msra.mxu0 0.0
        %406 = vmatpush.msra.mxu0 0.0
        %407 = vmatpush.msra.mxu0 0.0
        %408 = vmatpush.msra.mxu0 0.0
        %409 = vmatpush.msra.mxu0 0.0
        %410 = vmatpush.msra.mxu0 %v363
        %411 = vmatmul.f32.gmra.mxu0 %v373
        %v412 = vpop.f32.mrf.mxu0
        %v413 = vadd.f32 %v369, %v412
        %414 = vdwg.mxu0
        %v415 = vmax.f32 %v393, 0.0
        %v416 = vmax.f32 %v413, 0.0
        %v417 = vld [vmem:[%s3] sm:$0xf]
        %v418 = vld [vmem:[%s4] sm:$0xf]
        %420 = vset.pattern.permute.xlu0 0
        %421 = vperm.xlu0 %420, %v418
        %v422 = vpop.permute.xlu0 %421
        %vm424 = vcmask 31744
        %v426 = vsel %vm424, %v417, 0
        %vm428 = vcmask 1043456
        %v430 = vsel %vm428, %v415, 0
        %v433 = vsel %vm428, %v416, 0
        %435 = vmatpush.msra.mxu0 0.0
        %436 = vmatpush.msra.mxu0 0.0
        %437 = vmatpush.msra.mxu0 0.0
        %438 = vmatpush.msra.mxu0 0.0
        %439 = vmatpush.msra.mxu0 0.0
        %440 = vmatpush.msra.mxu0 0.0
        %441 = vmatpush.msra.mxu0 0.0
        %442 = vmatpush.msra.mxu0 0.0
        %443 = vmatpush.msra.mxu0 0.0
        %444 = vmatpush.msra.mxu0 0.0
        %445 = vmatpush.msra.mxu0 0.0
        %446 = vmatpush.msra.mxu0 0.0
        %447 = vmatpush.msra.mxu0 0.0
        %448 = vmatpush.msra.mxu0 0.0
        %449 = vmatpush.msra.mxu0 0.0
        %450 = vmatpush.msra.mxu0 %v430
        %451 = vmatmul.f32.gmra.mxu0 %v426
        %v452 = vpop.f32.mrf.mxu0
        %v453 = vadd.f32 %v422, %v452
        %454 = vdwg.mxu0
        %455 = vmatpush.msra.mxu0 0.0
        %456 = vmatpush.msra.mxu0 0.0
        %457 = vmatpush.msra.mxu0 0.0
        %458 = vmatpush.msra.mxu0 0.0
        %459 = vmatpush.msra.mxu0 0.0
        %460 = vmatpush.msra.mxu0 0.0
        %461 = vmatpush.msra.mxu0 0.0
        %462 = vmatpush.msra.mxu0 0.0
        %463 = vmatpush.msra.mxu0 0.0
        %464 = vmatpush.msra.mxu0 0.0
        %465 = vmatpush.msra.mxu0 0.0
        %466 = vmatpush.msra.mxu0 0.0
        %467 = vmatpush.msra.mxu0 0.0
        %468 = vmatpush.msra.mxu0 0.0
        %469 = vmatpush.msra.mxu0 0.0
        %470 = vmatpush.msra.mxu0 %v433
        %471 = vmatmul.f32.gmra.mxu0 %v426
        %v472 = vpop.f32.mrf.mxu0
        %v473 = vadd.f32 %v422, %v472
        %474 = vdwg.mxu0
        %v475 = vxor.u32 %v453, 2147483648
        %v476 = vxor.u32 %v473, 2147483648
        %v477 = vmul.f32 %v475, 1.442695
        %v478 = vpow.pop %v477
        %v479 = vmul.f32 %v476, 1.442695
        %v480 = vpow.pop %v479
        %v481 = vadd.f32 %v478, 1.0
        %v482 = vadd.f32 %v480, 1.0
        %v483 = vrcp.pop %v481
        %v484 = vmul.f32 %v481, %v483
        %v485 = vsub.f32 1.0, %v484
        %v486 = vmul.f32 %v483, %v485
        %v487 = vadd.f32 %v483, %v486
        %vm488 = vweird.f32 %v481
        %vm489 = vweird.f32 %v483
        %vm490 = vmor %vm488, %vm489
        %v491 = vsel %vm490, %v483, %v487
        %v492 = vand.u32 2147483647, %v481
        %vm493 = vcmp.eq.f32.partialorder %v492, 8.507059e+37
        %v494 = vand.u32 %v481, 2147483648
        %v495 = vor.u32 1.1754944e-38, %v494
        %v496 = vsel %vm493, %v495, %v491
        %v497 = vmul.f32 1.0, %v496
        %v498 = vrcp.pop %v482
        %v499 = vmul.f32 %v482, %v498
        %v500 = vsub.f32 1.0, %v499
        %v501 = vmul.f32 %v498, %v500
        %v502 = vadd.f32 %v498, %v501
        %vm503 = vweird.f32 %v482
        %vm504 = vweird.f32 %v498
        %vm505 = vmor %vm503, %vm504
        %v506 = vsel %vm505, %v498, %v502
        %v507 = vand.u32 2147483647, %v482
        %vm508 = vcmp.eq.f32.partialorder %v507, 8.507059e+37
        %v509 = vand.u32 %v482, 2147483648
        %v510 = vor.u32 1.1754944e-38, %v509
        %v511 = vsel %vm508, %v510, %v506
        %v512 = vmul.f32 1.0, %v511
        %v515 = vrot.slane %v512, 4
        %v516 = vsel %vm428, %v497, %v515
        %518 = vst [vmem:[#allocation2] sm:$0xff] %v516
      $region48: #{feature_guided_block.1} parent=43 // pred_fallthru
        _
      %v519 = vld [vmem:[#allocation2] ss:$4 sm:$0x3]
      %v520 = vld [vmem:[%s342] sm:$0xff]
      %v521 = vld [vmem:[%s342 + $0x8] sm:$0xff]
      %v523 = vperm.slane %v519, 0
      %v524 = vperm.slane %v519, 1
      %v527 = vmul.f32 %v523, %v520
      %v528 = vmul.f32 %v524, %v521
      %529 = vst [vmem:[%s356] sm:$0xff] %v527
      %530 = vst [vmem:[%s356 + $0x8] sm:$0xff] %v528
      %s531 = scalar_lea.vmem [#allocation2], 1
      %v532 = vld [vmem:[%s531] ss:$4 sm:$0x3]
      %s533 = scalar_lea.vmem %s342, 16
      %v534 = vld [vmem:[%s533] sm:$0xff]
      %v535 = vld [vmem:[%s533 + $0x8] sm:$0xff]
      %v537 = vperm.slane %v532, 0
      %v538 = vperm.slane %v532, 1
      %v541 = vmul.f32 %v537, %v534
      %v542 = vmul.f32 %v538, %v535
      %s543 = scalar_lea.vmem %s356, 16
      %544 = vst [vmem:[%s543] sm:$0xff] %v541
      %545 = vst [vmem:[%s543 + $0x8] sm:$0xff] %v542
      %s546 = scalar_lea.vmem [#allocation2], 2
      %v547 = vld [vmem:[%s546] ss:$4 sm:$0x3]
      %s548 = scalar_lea.vmem %s342, 32
      %v549 = vld [vmem:[%s548] sm:$0xff]
      %v550 = vld [vmem:[%s548 + $0x8] sm:$0xff]
      %v552 = vperm.slane %v547, 0
      %v553 = vperm.slane %v547, 1
      %v556 = vmul.f32 %v552, %v549
      %v557 = vmul.f32 %v553, %v550
      %s558 = scalar_lea.vmem %s356, 32
      %559 = vst [vmem:[%s558] sm:$0xff] %v556
      %560 = vst [vmem:[%s558 + $0x8] sm:$0xff] %v557
      %s561 = scalar_lea.vmem [#allocation2], 3
      %v562 = vld [vmem:[%s561] ss:$4 sm:$0x3]
      %s563 = scalar_lea.vmem %s342, 48
      %v564 = vld [vmem:[%s563] sm:$0xff]
      %v565 = vld [vmem:[%s563 + $0x8] sm:$0xff]
      %v567 = vperm.slane %v562, 0
      %v568 = vperm.slane %v562, 1
      %v571 = vmul.f32 %v567, %v564
      %v572 = vmul.f32 %v568, %v565
      %s573 = scalar_lea.vmem %s356, 48
      %574 = vst [vmem:[%s573] sm:$0xff] %v571
      %575 = vst [vmem:[%s573 + $0x8] sm:$0xff] %v572
      %s576 = smul.u32 2, %s23
      %p577 = scmp.lt.s32.totalorder %s22, 1
      %s578 = scalar_select %p577, %s22, 1
      %p579 = scmp.lt.s32.totalorder %s24, 0
      %s580 = scalar_select %p579, %s24, 0
      %p581 = scmp.lt.s32.totalorder %s576, 1
      %s582 = scalar_select %p581, %s576, 1
      %s583 = smul.addr %s580, 2
      %s584 = sadd.s32 %s582, %s583
      %s585 = smul.addr %s578, 8
      %s586 = sadd.s32 %s584, %s585
      %s587 = smul.addr %s586, 8
      %s588 = scalar_lea.vmem %s6, %s587
      // Predicated region
      $region49: #{feature_guided_block.1} parent=43 // pred_check
        %p589 = pneg %p200
      $region50: #{feature_guided_block.1} parent=43 // pred_check_branch
        %591 = sbr.rel (%p589) target = $region52
      $region51: #{feature_guided_block.1} parent=43 // pred_region
        %s592 = smul.u32 2, %s23
      $region52: #{feature_guided_block.1} parent=43 // pred_fallthru
        _
    $region44: #{feature_guided_block.1} parent=5 // pred_fallthru
      _
    %p593 = scmp.le.s32.totalorder 2, %s12
    // Predicated region
    $region53: #{feature_guided_block.1} parent=5 // pred_check
      %p594 = pneg %p593
    $region54: #{feature_guided_block.1} parent=5 // pred_check_branch
      %596 = sbr.rel (%p594) target = $region56
    $region55: #{feature_guided_block.1} parent=5 // pred_region
      %s597 = ssub.s32 %s12, 2
      // Predicated region
      $region57: #{feature_guided_block.1} parent=55 // pred_check
        %p598 = pneg %p206
      $region58: #{feature_guided_block.1} parent=55 // pred_check_branch
        %600 = sbr.rel (%p598) target = $region60
      $region59: #{feature_guided_block.1} parent=55 // pred_region
        %s601 = smul.u32 2, %s26
        %p602 = scmp.lt.s32.totalorder %s25, 1
        %s603 = scalar_select %p602, %s25, 1
        %p604 = scmp.lt.s32.totalorder %s27, 0
        %s605 = scalar_select %p604, %s27, 0
        %p606 = scmp.lt.s32.totalorder %s601, 1
        %s607 = scalar_select %p606, %s601, 1
        %s608 = smul.addr %s605, 2
        %s609 = sadd.s32 %s607, %s608
        %s610 = smul.addr %s603, 8
        %s611 = sadd.s32 %s609, %s610
        %s612 = smul.addr %s611, 8
        %s613 = scalar_lea.vmem %s6, %s612
      $region60: #{feature_guided_block.1} parent=55 // pred_fallthru
        _
    $region56: #{feature_guided_block.1} parent=5 // pred_fallthru
      _
  $region6: #{feature_guided_block.1} parent=0 // loop_footer
    %s16 = sadd.s32 1, %s12
  $region7: #{feature_guided_block.1} parent=0 // loop_footer_branch
    %11 = sbr.rel target = $region3
  $region8: #{feature_guided_block.1} parent=0 // loop_exit
    _

</llo_original>
